<compile_context>
chip_gen: v7x
topology: tpu7x:2x2x1
jax: 0.10.0
libtpu: 0.0.40
codegen_flags: <defaults>
</compile_context>

<pallas_src>
import jax
import jax.numpy as jnp
from jax.experimental import pallas as pl
from jax.experimental.pallas import tpu as pltpu

_HID = 128     # padded hidden / output lane width (lane-dense)
_IN_PAD = 8    # input features padded 7 -> 8 (sublane-friendly, K-aligned)


def _round_up(n, m):
    return ((n + m - 1) // m) * m


# ----------------------------------------------------------------------------
# Kernel: whole 5-layer Block-chain forward for one (bm, *) batch tile.
# All weights (~130 KiB in bf16) stay VMEM-resident; the grid only tiles batch.
# ----------------------------------------------------------------------------
def mlp_kernel(x_ref, w1_ref, ws_ref, b_ref, o_ref):
    # Block 1: Linear(7->64, zero-padded to 8->128) + ReLU  (dropout = identity)
    h = jnp.dot(x_ref[...].astype(jnp.bfloat16), w1_ref[...],
                preferred_element_type=jnp.float32)
    h = jnp.maximum(h + b_ref[0:1, :], 0.0)

    # Blocks 2-4: Linear (zero-padded to 128x128) + ReLU
    for layer in range(3):
        h = jnp.dot(h.astype(jnp.bfloat16), ws_ref[layer],
                    preferred_element_type=jnp.float32)
        h = jnp.maximum(h + b_ref[layer + 1:layer + 2, :], 0.0)

    # Head: Linear(64->5, zero-padded to 128->128), no activation
    out = jnp.dot(h.astype(jnp.bfloat16), ws_ref[3],
                  preferred_element_type=jnp.float32) + b_ref[4:5, :]
    o_ref[...] = out.astype(o_ref.dtype)


def mlp_forward(x, params, *, bm=512):
    """x: (B, 7) float32. params: 5 (W, b) pairs with W stored (in, out)."""
    B, in_features = x.shape
    num_classes = params[-1][0].shape[1]
    assert len(params) == 5 and in_features <= _IN_PAD and num_classes <= _HID

    # ---- batch tile: big enough to feed the MXU, but keep >= 2 grid steps
    # when the batch allows it (v7x has 2 TensorCores). -----------------------
    bm = max(8, min(bm, _round_up(B, 8)))
    if pl.cdiv(B, bm) < 2 and B > 8:
        bm = _round_up(pl.cdiv(B, 2), 8)
    grid = pl.cdiv(B, bm)
    b_pad = grid * bm
    # NOTE: bm is capped well below ~2K rows, so (bm, 128) f32 intermediates
    # stay small; no in-kernel sub-tiling needed.

    # ---- pack parameters into 3 lane-dense, zero-padded, VMEM-resident arrays
    def pad2(a, rows, cols):
        return jnp.pad(a, ((0, rows - a.shape[0]), (0, cols - a.shape[1])))

    (w1, b1), (w2, b2), (w3, b3), (w4, b4), (w5, b5) = params
    w1_p = pad2(w1, _IN_PAD, _HID).astype(jnp.bfloat16)                 # (8, 128)
    ws = jnp.stack([pad2(w, _HID, _HID).astype(jnp.bfloat16)
                    for w in (w2, w3, w4, w5)])                         # (4, 128, 128)
    bs = jnp.stack([jnp.pad(b, (0, _HID - b.shape[0]))
                    for b in (b1, b2, b3, b4, b5)]).astype(jnp.float32)  # (5, 128)

    # ---- pad activations: features 7 -> 8, batch B -> grid * bm -------------
    x_p = jnp.pad(x, ((0, b_pad - B), (0, _IN_PAD - in_features)))

    out_padded = pl.pallas_call(
        mlp_kernel,
        out_shape=jax.ShapeDtypeStruct((b_pad, _HID), jnp.float32),
        grid_spec=pltpu.PrefetchScalarGridSpec(
            num_scalar_prefetch=0,
            grid=(grid,),
            in_specs=[
                pl.BlockSpec((bm, _IN_PAD), lambda i: (i, 0)),       # batch tile
                pl.BlockSpec((_IN_PAD, _HID), lambda i: (0, 0)),     # w1 (resident)
                pl.BlockSpec((4, _HID, _HID), lambda i: (0, 0, 0)),  # w2..w5 (resident)
                pl.BlockSpec((5, _HID), lambda i: (0, 0)),           # biases (resident)
            ],
            out_specs=pl.BlockSpec((bm, _HID), lambda i: (i, 0)),
        ),
        compiler_params=pltpu.CompilerParams(
            dimension_semantics=("parallel",),
            vmem_limit_bytes=32 * 1024 * 1024,   # explicit; safe on v5e/v6e/v7x
        ),
    )(x_p, w1_p, ws, bs)

    # lane-dense (bm, 128) output; strip padding back to (B, num_classes).
    return out_padded[:B, :num_classes]


# ----------------------------------------------------------------------------
# Deterministic parameter init (kaiming_normal_ for ReLU, zero biases),
# mirroring the PyTorch model's _init_weights.
# ----------------------------------------------------------------------------
def init_params(key, dims):
    params = []
    for fan_in, fan_out in zip(dims[:-1], dims[1:]):
        key, sub = jax.random.split(key)
        std = (2.0 / fan_in) ** 0.5
        # PyTorch weight is (out, in); we store the transpose (in, out).
        w = std * jax.random.normal(sub, (fan_in, fan_out), dtype=jnp.float32)
        b = jnp.zeros((fan_out,), dtype=jnp.float32)
        params.append((w, b))
    return params


def mlp_reference_f32(x, params):
    h = x
    for w, b in params[:-1]:
        h = jnp.maximum(h @ w + b, 0.0)
    w, b = params[-1]
    return h @ w + b


def mlp_reference_mixed(x, params):
    """Same precision recipe as the kernel: bf16 operands, f32 accumulation."""
    h = x
    for idx, (w, b) in enumerate(params):
        h = jnp.dot(h.astype(jnp.bfloat16), w.astype(jnp.bfloat16),
                    preferred_element_type=jnp.float32) + b
        if idx < len(params) - 1:
            h = jnp.maximum(h, 0.0)
    return h


if __name__ == "__main__":
    key = jax.random.PRNGKey(0)
    k_x, k_p = jax.random.split(key)

    input_size, num_classes = 7, 5
    dims = [input_size, 64, 128, 128, 64, num_classes]

    batch = 50  # deliberately NOT a multiple of the tile -> exercises padding
    x = jax.random.normal(k_x, (batch, input_size), dtype=jnp.float32)
    params = init_params(k_p, dims)

    ref_mixed = mlp_reference_mixed(x, params)
    ref_f32 = mlp_reference_f32(x, params)

    # small explicit tile (multi-step grid + tail padding path)
    out = jax.block_until_ready(mlp_forward(x, params, bm=16))
    assert out.shape == (batch, num_classes)
    assert jnp.allclose(out, ref_mixed, atol=1e-2, rtol=1e-2), "mismatch (mixed ref)"
    assert jnp.allclose(out, ref_f32, atol=1e-1, rtol=1e-1), "mismatch (f32 ref)"

    # default large-tile path (auto-clamps bm, still >= 2 grid steps)
    out2 = jax.block_until_ready(mlp_forward(x, params))
    assert out2.shape == (batch, num_classes)
    assert jnp.allclose(out2, ref_mixed, atol=1e-2, rtol=1e-2), "mismatch (default bm)"

    print("KERNEL_OK")
</pallas_src>

<mosaic_0001>
module attributes {stable_mosaic.version = 11 : i64} {
  func.func @mlp_kernel(%arg0: i32, %arg1: memref<16x8xf32, #tpu.memory_space<vmem>>, %arg2: memref<8x128xbf16, #tpu.memory_space<vmem>>, %arg3: memref<4x128x128xbf16, #tpu.memory_space<vmem>>, %arg4: memref<5x128xf32, #tpu.memory_space<vmem>>, %arg5: memref<16x128xf32, #tpu.memory_space<vmem>>) attributes {dimension_semantics = [#tpu.dimension_semantics<parallel>], iteration_bounds = array<i64: 4>, scalar_prefetch = 0 : i64, scratch_operands = 0 : i64, tpu.core_type = #tpu.core_type<tc>, window_params = [{transform_indices = @transform_0, window_bounds = array<i64: 16, 8>}, {pipeline_mode = #tpu.pipeline_mode<synchronous>, transform_indices = @transform_1, window_bounds = array<i64: 8, 128>}, {pipeline_mode = #tpu.pipeline_mode<synchronous>, transform_indices = @transform_2, window_bounds = array<i64: 4, 128, 128>}, {pipeline_mode = #tpu.pipeline_mode<synchronous>, transform_indices = @transform_3, window_bounds = array<i64: 5, 128>}, {transform_indices = @transform_4, window_bounds = array<i64: 16, 128>}]} {
    %c0 = arith.constant 0 : index
    %c0_0 = arith.constant 0 : index
    %0 = vector.load %arg1[%c0, %c0_0] : memref<16x8xf32, #tpu.memory_space<vmem>>, vector<16x8xf32>
    %1 = arith.truncf %0 : vector<16x8xf32> to vector<16x8xbf16>
    %c0_1 = arith.constant 0 : index
    %c0_2 = arith.constant 0 : index
    %2 = vector.load %arg2[%c0_1, %c0_2] : memref<8x128xbf16, #tpu.memory_space<vmem>>, vector<8x128xbf16>
    %cst = arith.constant dense<0.000000e+00> : vector<16x128xf32>
    %3 = tpu.matmul %1, %2, %cst {dimension_numbers = #tpu.dot_dimension_numbers<[1], [0], [0], [1], [0, 0, 1, 1], [], []>} : vector<16x8xbf16>, vector<8x128xbf16>, vector<16x128xf32> -> vector<16x128xf32>
    %c0_3 = arith.constant 0 : index
    %c0_4 = arith.constant 0 : index
    %4 = vector.load %arg4[%c0_3, %c0_4] : memref<5x128xf32, #tpu.memory_space<vmem>>, vector<1x128xf32>
    %5 = vector.broadcast %4 : vector<1x128xf32> to vector<16x128xf32>
    %6 = arith.addf %3, %5 : vector<16x128xf32>
    %cst_5 = arith.constant 0.000000e+00 : f32
    %7 = vector.broadcast %cst_5 : f32 to vector<16x128xf32>
    %8 = arith.maximumf %6, %7 : vector<16x128xf32>
    %9 = arith.truncf %8 : vector<16x128xf32> to vector<16x128xbf16>
    %c0_6 = arith.constant 0 : index
    %c0_7 = arith.constant 0 : index
    %c0_8 = arith.constant 0 : index
    %10 = vector.load %arg3[%c0_6, %c0_7, %c0_8] : memref<4x128x128xbf16, #tpu.memory_space<vmem>>, vector<1x128x128xbf16>
    %11 = vector.shape_cast %10 : vector<1x128x128xbf16> to vector<128x128xbf16>
    %cst_9 = arith.constant dense<0.000000e+00> : vector<16x128xf32>
    %12 = tpu.matmul %9, %11, %cst_9 {dimension_numbers = #tpu.dot_dimension_numbers<[1], [0], [0], [1], [0, 0, 1, 1], [], []>} : vector<16x128xbf16>, vector<128x128xbf16>, vector<16x128xf32> -> vector<16x128xf32>
    %c1 = arith.constant 1 : index
    %c0_10 = arith.constant 0 : index
    %13 = vector.load %arg4[%c1, %c0_10] : memref<5x128xf32, #tpu.memory_space<vmem>>, vector<1x128xf32>
    %14 = vector.broadcast %13 : vector<1x128xf32> to vector<16x128xf32>
    %15 = arith.addf %12, %14 : vector<16x128xf32>
    %cst_11 = arith.constant 0.000000e+00 : f32
    %16 = vector.broadcast %cst_11 : f32 to vector<16x128xf32>
    %17 = arith.maximumf %15, %16 : vector<16x128xf32>
    %18 = arith.truncf %17 : vector<16x128xf32> to vector<16x128xbf16>
    %c1_12 = arith.constant 1 : index
    %c0_13 = arith.constant 0 : index
    %c0_14 = arith.constant 0 : index
    %19 = vector.load %arg3[%c1_12, %c0_13, %c0_14] : memref<4x128x128xbf16, #tpu.memory_space<vmem>>, vector<1x128x128xbf16>
    %20 = vector.shape_cast %19 : vector<1x128x128xbf16> to vector<128x128xbf16>
    %cst_15 = arith.constant dense<0.000000e+00> : vector<16x128xf32>
    %21 = tpu.matmul %18, %20, %cst_15 {dimension_numbers = #tpu.dot_dimension_numbers<[1], [0], [0], [1], [0, 0, 1, 1], [], []>} : vector<16x128xbf16>, vector<128x128xbf16>, vector<16x128xf32> -> vector<16x128xf32>
    %c2 = arith.constant 2 : index
    %c0_16 = arith.constant 0 : index
    %22 = vector.load %arg4[%c2, %c0_16] : memref<5x128xf32, #tpu.memory_space<vmem>>, vector<1x128xf32>
    %23 = vector.broadcast %22 : vector<1x128xf32> to vector<16x128xf32>
    %24 = arith.addf %21, %23 : vector<16x128xf32>
    %cst_17 = arith.constant 0.000000e+00 : f32
    %25 = vector.broadcast %cst_17 : f32 to vector<16x128xf32>
    %26 = arith.maximumf %24, %25 : vector<16x128xf32>
    %27 = arith.truncf %26 : vector<16x128xf32> to vector<16x128xbf16>
    %c2_18 = arith.constant 2 : index
    %c0_19 = arith.constant 0 : index
    %c0_20 = arith.constant 0 : index
    %28 = vector.load %arg3[%c2_18, %c0_19, %c0_20] : memref<4x128x128xbf16, #tpu.memory_space<vmem>>, vector<1x128x128xbf16>
    %29 = vector.shape_cast %28 : vector<1x128x128xbf16> to vector<128x128xbf16>
    %cst_21 = arith.constant dense<0.000000e+00> : vector<16x128xf32>
    %30 = tpu.matmul %27, %29, %cst_21 {dimension_numbers = #tpu.dot_dimension_numbers<[1], [0], [0], [1], [0, 0, 1, 1], [], []>} : vector<16x128xbf16>, vector<128x128xbf16>, vector<16x128xf32> -> vector<16x128xf32>
    %c3 = arith.constant 3 : index
    %c0_22 = arith.constant 0 : index
    %31 = vector.load %arg4[%c3, %c0_22] : memref<5x128xf32, #tpu.memory_space<vmem>>, vector<1x128xf32>
    %32 = vector.broadcast %31 : vector<1x128xf32> to vector<16x128xf32>
    %33 = arith.addf %30, %32 : vector<16x128xf32>
    %cst_23 = arith.constant 0.000000e+00 : f32
    %34 = vector.broadcast %cst_23 : f32 to vector<16x128xf32>
    %35 = arith.maximumf %33, %34 : vector<16x128xf32>
    %36 = arith.truncf %35 : vector<16x128xf32> to vector<16x128xbf16>
    %c3_24 = arith.constant 3 : index
    %c0_25 = arith.constant 0 : index
    %c0_26 = arith.constant 0 : index
    %37 = vector.load %arg3[%c3_24, %c0_25, %c0_26] : memref<4x128x128xbf16, #tpu.memory_space<vmem>>, vector<1x128x128xbf16>
    %38 = vector.shape_cast %37 : vector<1x128x128xbf16> to vector<128x128xbf16>
    %cst_27 = arith.constant dense<0.000000e+00> : vector<16x128xf32>
    %39 = tpu.matmul %36, %38, %cst_27 {dimension_numbers = #tpu.dot_dimension_numbers<[1], [0], [0], [1], [0, 0, 1, 1], [], []>} : vector<16x128xbf16>, vector<128x128xbf16>, vector<16x128xf32> -> vector<16x128xf32>
    %c4 = arith.constant 4 : index
    %c0_28 = arith.constant 0 : index
    %40 = vector.load %arg4[%c4, %c0_28] : memref<5x128xf32, #tpu.memory_space<vmem>>, vector<1x128xf32>
    %41 = vector.broadcast %40 : vector<1x128xf32> to vector<16x128xf32>
    %42 = arith.addf %39, %41 : vector<16x128xf32>
    %c0_29 = arith.constant 0 : index
    %c0_30 = arith.constant 0 : index
    %43 = vector.load %arg5[%c0_29, %c0_30] : memref<16x128xf32, #tpu.memory_space<vmem>>, vector<16x128xf32>
    tpu.vector_store %arg5[%c0_29, %c0_30], %42 {strides = array<i32>} : memref<16x128xf32, #tpu.memory_space<vmem>>, vector<16x128xf32>,
    return
  }
  func.func @transform_0(%arg0: i32) -> (i32, i32) {
    %c0_i32 = arith.constant 0 : i32
    %c0_i32_0 = arith.constant 0 : i32
    return %arg0, %c0_i32 : i32, i32
  }
  func.func @transform_1(%arg0: i32) -> (i32, i32) {
    %c0_i32 = arith.constant 0 : i32
    %c0_i32_0 = arith.constant 0 : i32
    %c0_i32_1 = arith.constant 0 : i32
    return %c0_i32, %c0_i32_0 : i32, i32
  }
  func.func @transform_2(%arg0: i32) -> (i32, i32, i32) {
    %c0_i32 = arith.constant 0 : i32
    %c0_i32_0 = arith.constant 0 : i32
    %c0_i32_1 = arith.constant 0 : i32
    %c0_i32_2 = arith.constant 0 : i32
    return %c0_i32, %c0_i32_0, %c0_i32_1 : i32, i32, i32
  }
  func.func @transform_3(%arg0: i32) -> (i32, i32) {
    %c0_i32 = arith.constant 0 : i32
    %c0_i32_0 = arith.constant 0 : i32
    %c0_i32_1 = arith.constant 0 : i32
    return %c0_i32, %c0_i32_0 : i32, i32
  }
  func.func @transform_4(%arg0: i32) -> (i32, i32) {
    %c0_i32 = arith.constant 0 : i32
    %c0_i32_0 = arith.constant 0 : i32
    return %arg0, %c0_i32 : i32, i32
  }
}

</mosaic_0001>

<llo_original>
// kernel: tpu_custom_call.1
$region0: #{tpu_custom_call.1}
  #allocation0 [shape = 'u32[]', space=smem, size = 0x4, offset = 0x4, fixed_abs, tag = 'smem constant byte address 0x4 - core index']
  #allocation1 [shape = 'u32[144,128]{1,0:T(1,128)}', space=vmem, size = 0x12000, scoped, tag = 'internal scratch']
  %s0 = inlined_call_operand.vmem [shape: f32[64,8], index: 0, kind: input, shape index: {}]
  %s1 = inlined_call_operand.vmem [shape: bf16[8,128], index: 1, kind: input, shape index: {}]
  %s2 = inlined_call_operand.hbm [shape: bf16[4,128,128], index: 2, kind: input, shape index: {}]
  %s3 = inlined_call_operand.vmem [shape: f32[5,128], index: 3, kind: input, shape index: {}]
  %s4 = inlined_call_operand.hbm [shape: f32[64,128], index: 4, kind: output, shape index: {}]
  %s5 = sld [smem:[#allocation0]]
  $region53: #{tpu_custom_call.1} parent=0
    _
  %s7 = ssub.s32 1, %s5
  %s8 = scalar_select 0, %s7, %s5
  $region1: #{tpu_custom_call.1} parent=0
    #allocation2 [shape = 'u8[131072]{0}', space=vmem, size = 0x20000, scoped, tag = 'input window, operand 2, single buffered']
    #allocation3 [shape = 's32[2]{0}', space=sflag, size = 0x8, scoped, tag = 'scoped memory for tpu_custom_call.1']
    #allocation4 [shape = 's32[2]{0}', space=sflag, size = 0x8, scoped, tag = 'scoped memory for tpu_custom_call.1']
    #allocation5 [shape = 'u8[16384]{0}', space=vmem, size = 0x4000, scoped, tag = 'output window, operand 0']
    %9 = vsyncpa [#allocation3], 0
    %10 = vsyncpa [#allocation4], 0
    %s11 = scalar_lea.sflag [#allocation4], 1
    %12 = vsyncpa %s11, 0
    loop: start=0, step=1, limit=6
    $region2: #{tpu_custom_call.1} parent=1 // loop_pre_header
      _
    $region3: #{tpu_custom_call.1} parent=1 // loop_header
      %s14 = sphi 0, %s18
      %p15 = scmp.ge.s32.totalorder %s14, 6
      %s24 = sphi 0, %s26
      %s27 = sphi 0, %s24
      %s28 = sphi 0, %s27
      %s44 = sphi 0, %s28
      %s48 = sphi 0, %s48
      %s50 = sphi 0, %s48
      %s51 = sphi 0, %s50
      %s65 = sphi 0, %s51
      %s69 = sphi 0, %s69
      %s71 = sphi 0, %s69
      %s72 = sphi 0, %s71
      %s86 = sphi 0, %s72
      %s90 = sphi 0, %s90
      %s92 = sphi 0, %s90
      %s93 = sphi 0, %s92
      %s107 = sphi 0, %s93
      %s113 = sphi 0, %s115
      %s116 = sphi 0, %s113
      %s117 = sphi 0, %s116
      %s133 = sphi 0, %s117
    $region4: #{tpu_custom_call.1} parent=1 // loop_header_branch
      %17 = sbr.rel (%p15) target = $region8
    $region5: #{tpu_custom_call.1} parent=1 // loop_body
      %s19 = ssub.s32 %s14, 1
      %s20 = ssub.s32 %s14, 2
      %s21 = sadd.s32 %s14, 1
      %s22 = ssub.s32 %s14, %s21
      %p23 = scmp.eq.s32.totalorder %s22, 0
      %s25 = sadd.s32 %s24, 1
      %s26 = scalar_select %p23, %s24, %s25
      %p29 = pneg %p23
      %p30 = scmp.eq.s32.totalorder %s14, 3
      %p31 = por %p29, %p30
      %p32 = scmp.ne.s32.totalorder %s24, %s27
      %p33 = scmp.eq.s32.totalorder %s14, 0
      %p34 = por %p32, %p33
      %p35 = scmp.ne.s32.totalorder %s24, %s27
      %p36 = scmp.eq.s32.totalorder %s19, 3
      %p37 = por %p35, %p36
      %p38 = scmp.ne.s32.totalorder %s27, %s28
      %p39 = scmp.eq.s32.totalorder %s19, 0
      %p40 = por %p38, %p39
      %p41 = scmp.ne.s32.totalorder %s27, %s28
      %p42 = scmp.eq.s32.totalorder %s20, 3
      %p43 = por %p41, %p42
      %p45 = scmp.ne.s32.totalorder %s28, %s44
      %p46 = scmp.eq.s32.totalorder %s20, 0
      %p47 = por %p45, %p46
      %s49 = sadd.s32 %s48, 1
      %p52 = scmp.eq.s32.totalorder %s14, 3
      %p53 = scmp.ne.s32.totalorder %s48, %s50
      %p54 = scmp.eq.s32.totalorder %s14, 0
      %p55 = por %p53, %p54
      %p56 = scmp.ne.s32.totalorder %s48, %s50
      %p57 = scmp.eq.s32.totalorder %s19, 3
      %p58 = por %p56, %p57
      %p59 = scmp.ne.s32.totalorder %s50, %s51
      %p60 = scmp.eq.s32.totalorder %s19, 0
      %p61 = por %p59, %p60
      %p62 = scmp.ne.s32.totalorder %s50, %s51
      %p63 = scmp.eq.s32.totalorder %s20, 3
      %p64 = por %p62, %p63
      %p66 = scmp.ne.s32.totalorder %s51, %s65
      %p67 = scmp.eq.s32.totalorder %s20, 0
      %p68 = por %p66, %p67
      %s70 = sadd.s32 %s69, 1
      %p73 = scmp.eq.s32.totalorder %s14, 3
      %p74 = scmp.ne.s32.totalorder %s69, %s71
      %p75 = scmp.eq.s32.totalorder %s14, 0
      %p76 = por %p74, %p75
      %p77 = scmp.ne.s32.totalorder %s69, %s71
      %p78 = scmp.eq.s32.totalorder %s19, 3
      %p79 = por %p77, %p78
      %p80 = scmp.ne.s32.totalorder %s71, %s72
      %p81 = scmp.eq.s32.totalorder %s19, 0
      %p82 = por %p80, %p81
      %p83 = scmp.ne.s32.totalorder %s71, %s72
      %p84 = scmp.eq.s32.totalorder %s20, 3
      %p85 = por %p83, %p84
      %p87 = scmp.ne.s32.totalorder %s72, %s86
      %p88 = scmp.eq.s32.totalorder %s20, 0
      %p89 = por %p87, %p88
      %s91 = sadd.s32 %s90, 1
      %p94 = scmp.eq.s32.totalorder %s14, 3
      %p95 = scmp.ne.s32.totalorder %s90, %s92
      %p96 = scmp.eq.s32.totalorder %s14, 0
      %p97 = por %p95, %p96
      %p98 = scmp.ne.s32.totalorder %s90, %s92
      %p99 = scmp.eq.s32.totalorder %s19, 3
      %p100 = por %p98, %p99
      %p101 = scmp.ne.s32.totalorder %s92, %s93
      %p102 = scmp.eq.s32.totalorder %s19, 0
      %p103 = por %p101, %p102
      %p104 = scmp.ne.s32.totalorder %s92, %s93
      %p105 = scmp.eq.s32.totalorder %s20, 3
      %p106 = por %p104, %p105
      %p108 = scmp.ne.s32.totalorder %s93, %s107
      %p109 = scmp.eq.s32.totalorder %s20, 0
      %p110 = por %p108, %p109
      %s111 = ssub.s32 %s14, %s21
      %p112 = scmp.eq.s32.totalorder %s111, 0
      %s114 = sadd.s32 %s113, 1
      %s115 = scalar_select %p112, %s113, %s114
      %p118 = pneg %p112
      %p119 = scmp.eq.s32.totalorder %s14, 3
      %p120 = por %p118, %p119
      %p121 = scmp.ne.s32.totalorder %s113, %s116
      %p122 = scmp.eq.s32.totalorder %s14, 0
      %p123 = por %p121, %p122
      %p124 = scmp.ne.s32.totalorder %s113, %s116
      %p125 = scmp.eq.s32.totalorder %s19, 3
      %p126 = por %p124, %p125
      %p127 = scmp.ne.s32.totalorder %s116, %s117
      %p128 = scmp.eq.s32.totalorder %s19, 0
      %p129 = por %p127, %p128
      %p130 = scmp.ne.s32.totalorder %s116, %s117
      %p131 = scmp.eq.s32.totalorder %s20, 3
      %p132 = por %p130, %p131
      %p134 = scmp.ne.s32.totalorder %s117, %s133
      %p135 = scmp.eq.s32.totalorder %s20, 0
      %p136 = por %p134, %p135
      %p137 = scmp.le.s32.totalorder 1, %s14
      %p138 = scmp.lt.s32.totalorder %s14, 5
      %p139 = pnand %p137, %p138
      %p140 = pneg %p139
      // Predicated region
      $region9: #{tpu_custom_call.1} parent=5 // pred_check
        _
      $region10: #{tpu_custom_call.1} parent=5 // pred_check_branch
        %142 = sbr.rel (%p139) target = $region12
      $region11: #{tpu_custom_call.1} parent=5 // pred_region
        %s143 = ssub.s32 %s14, 1
        // Predicated region
        $region13: #{tpu_custom_call.1} parent=11 // pred_check
          %p144 = pneg %p61
        $region14: #{tpu_custom_call.1} parent=11 // pred_check_branch
          %146 = sbr.rel (%p144) target = $region16
        $region15: #{tpu_custom_call.1} parent=11 // pred_region
          _
        $region16: #{tpu_custom_call.1} parent=11 // pred_fallthru
          _
        // Predicated region
        $region17: #{tpu_custom_call.1} parent=11 // pred_check
          %p147 = pneg %p82
        $region18: #{tpu_custom_call.1} parent=11 // pred_check_branch
          %149 = sbr.rel (%p147) target = $region20
        $region19: #{tpu_custom_call.1} parent=11 // pred_region
          %s151 = ssub.s32 4096, 4096
          %152 = vsyncadd [#allocation3], %s151
          %s153 = sshll.u32 [#allocation2], 4
          %s154 = int_to_ptr.vmem [resolvable:$true] %s153
          %159 = dma.hbm_to_vmem [thread:$0]  %s2, 4096, %s154, [#allocation3], 64, 64, 4
        $region20: #{tpu_custom_call.1} parent=11 // pred_fallthru
          _
        // Predicated region
        $region21: #{tpu_custom_call.1} parent=11 // pred_check
          %p160 = pneg %p103
        $region22: #{tpu_custom_call.1} parent=11 // pred_check_branch
          %162 = sbr.rel (%p160) target = $region24
        $region23: #{tpu_custom_call.1} parent=11 // pred_region
          _
        $region24: #{tpu_custom_call.1} parent=11 // pred_fallthru
          _
      $region12: #{tpu_custom_call.1} parent=5 // pred_fallthru
        _
      %p163 = scmp.lt.s32.totalorder %s14, 4
      // Predicated region
      $region25: #{tpu_custom_call.1} parent=5 // pred_check
        %p164 = pneg %p163
      $region26: #{tpu_custom_call.1} parent=5 // pred_check_branch
        %166 = sbr.rel (%p164) target = $region28
      $region27: #{tpu_custom_call.1} parent=5 // pred_region
        // Predicated region
        $region29: #{tpu_custom_call.1} parent=27 // pred_check
          %p167 = pneg %p34
        $region30: #{tpu_custom_call.1} parent=27 // pred_check_branch
          %169 = sbr.rel (%p167) target = $region32
        $region31: #{tpu_custom_call.1} parent=27 // pred_region
          %s170 = smul.u32 2, %s14
          %p171 = scmp.lt.s32.totalorder %s170, 7
          %s172 = scalar_select %p171, %s170, 7
          %s173 = smul.addr %s172, 8
          %s174 = scalar_lea.vmem %s0, %s173
          %s175 = smul.u32 2, %s14
        $region32: #{tpu_custom_call.1} parent=27 // pred_fallthru
          _
      $region28: #{tpu_custom_call.1} parent=5 // pred_fallthru
        _
      %p176 = scmp.le.s32.totalorder 1, %s14
      %p177 = scmp.lt.s32.totalorder %s14, 5
      %p178 = pnand %p176, %p177
      %p179 = pneg %p178
      // Predicated region
      $region33: #{tpu_custom_call.1} parent=5 // pred_check
        _
      $region34: #{tpu_custom_call.1} parent=5 // pred_check_branch
        %181 = sbr.rel (%p178) target = $region36
      $region35: #{tpu_custom_call.1} parent=5 // pred_region
        %s182 = ssub.s32 %s14, 1
        // Predicated region
        $region37: #{tpu_custom_call.1} parent=35 // pred_check
          %p183 = pneg %p82
        $region38: #{tpu_custom_call.1} parent=35 // pred_check_branch
          %185 = sbr.rel (%p183) target = $region40
        $region39: #{tpu_custom_call.1} parent=35 // pred_region
          %186 = dma.done [#allocation3], 4096
        $region40: #{tpu_custom_call.1} parent=35 // pred_fallthru
          _
        %s187 = smul.u32 2, %s19
        %p188 = scmp.lt.s32.totalorder %s187, 7
        %s189 = scalar_select %p188, %s187, 7
        %s190 = smul.addr %s189, 8
        %s191 = scalar_lea.vmem %s0, %s190
        %p192 = pneg %p40
        %p193 = pneg %p37
        %p194 = pneg %p61
        %p195 = pneg %p58
        %p196 = pneg %p82
        %p197 = pneg %p79
        %p198 = pneg %p103
        %p199 = pneg %p100
        %p200 = pneg %p129
        %p201 = pneg %p126
        %s202 = sand.u32 %s116, 1
        %s203 = scalar_lea.sflag [#allocation4], %s202
        %s204 = sand.u32 %s116, 1
        %s205 = smul.addr %s204, 16
        %s206 = scalar_lea.vmem [#allocation5], %s205
        %s207 = smul.u32 2, %s19
        %p208 = scmp.lt.s32.totalorder %s207, 7
        %s209 = scalar_select %p208, %s207, 7
        %s210 = smul.addr %s209, 8
        %s211 = scalar_lea.vmem %s0, %s210
        %s212 = smul.u32 2, %s19
        %s213 = smul.u32 2, %s19
        %v215 = vld [vmem:[%s211] sm:$0xff]
        %v216 = vld [vmem:[%s211 + $0x8] sm:$0xff]
        %v217 = vpack.c.bf16 %v216, %v215
        %v218 = vld [vmem:[%s1] sm:$0xf]
        %v219 = vld [vmem:[%s3] sm:$0x1]
        %v220 = vlaneseq
        %v221 = vshrl.u32 %v220, 7
        %v222 = vsub.s32 0, %v221
        %v223 = vrot.slane %v219, %v222
        %vm224 = vcmask 64512
        %v226 = vsel %vm224, %v217, 0
        %vm228 = vcmask 1043456
        %v230 = vsel %vm228, %v218, 0
        %232 = vmatprep.subr.bf16.mxu0 0
        %233 = vmatpush1.bf16.msra.mxu0 %v230
        %234 = vmatprep.subr.bf16.mxu0 0
        %235 = vmatpush1.bf16.msra.mxu0 0
        %236 = vmatprep.subr.bf16.mxu0 0
        %237 = vmatpush1.bf16.msra.mxu0 0
        %238 = vmatprep.subr.bf16.mxu0 0
        %239 = vmatpush1.bf16.msra.mxu0 0
        %240 = vmatprep.subr.bf16.mxu0 0
        %241 = vmatpush1.bf16.msra.mxu0 0
        %242 = vmatprep.subr.bf16.mxu0 0
        %243 = vmatpush1.bf16.msra.mxu0 0
        %244 = vmatprep.subr.bf16.mxu0 0
        %245 = vmatpush1.bf16.msra.mxu0 0
        %246 = vmatprep.subr.bf16.mxu0 0
        %247 = vmatpush1.bf16.msra.mxu0 0
        %248 = vmatprep.subr.bf16.mxu0 0
        %249 = vmatpush1.bf16.msra.mxu0 0
        %250 = vmatprep.subr.bf16.mxu0 0
        %251 = vmatpush1.bf16.msra.mxu0 0
        %252 = vmatprep.subr.bf16.mxu0 0
        %253 = vmatpush1.bf16.msra.mxu0 0
        %254 = vmatprep.subr.bf16.mxu0 0
        %255 = vmatpush1.bf16.msra.mxu0 0
        %256 = vmatprep.subr.bf16.mxu0 0
        %257 = vmatpush1.bf16.msra.mxu0 0
        %258 = vmatprep.subr.bf16.mxu0 0
        %259 = vmatpush1.bf16.msra.mxu0 0
        %260 = vmatprep.subr.bf16.mxu0 0
        %261 = vmatpush1.bf16.msra.mxu0 0
        %262 = vmatprep.subr.bf16.mxu0 0
        %263 = vmatpush1.bf16.msra.mxu0 0
        %264 = vmatprep.mubr.bf16.mxu0 0
        %265 = vmatmul.mubr.bf16.gmra.mrb[0].mxu0 %v226
        %v266 = vpop.f32.mrb[0].mxu0
        %v267 = vadd.f32 %v223, %v266
        %v268 = vpop.f32.mrb[0].mxu0
        %v269 = vpop.f32.mrb[0].mxu0
        %v270 = vadd.f32 %v223, %v269
        %v271 = vpop.f32.mrb[0].mxu0
        %272 = vdwg.mxu0
        %v273 = vmax.f32 %v267, 0.0
        %v274 = vmax.f32 %v270, 0.0
        %v275 = vpack.c.bf16 %v274, %v273
        %v276 = vld [vmem:[#allocation2] sm:$0xf]
        %v277 = vld [vmem:[#allocation2 + $0x4] sm:$0xf]
        %v278 = vld [vmem:[#allocation2 + $0x8] sm:$0xf]
        %v279 = vld [vmem:[#allocation2 + $0xc] sm:$0xf]
        %v280 = vld [vmem:[#allocation2 + $0x10] sm:$0xf]
        %v281 = vld [vmem:[#allocation2 + $0x14] sm:$0xf]
        %v282 = vld [vmem:[#allocation2 + $0x18] sm:$0xf]
        %v283 = vld [vmem:[#allocation2 + $0x1c] sm:$0xf]
        %v284 = vld [vmem:[#allocation2 + $0x20] sm:$0xf]
        %v285 = vld [vmem:[#allocation2 + $0x24] sm:$0xf]
        %v286 = vld [vmem:[#allocation2 + $0x28] sm:$0xf]
        %v287 = vld [vmem:[#allocation2 + $0x2c] sm:$0xf]
        %v288 = vld [vmem:[#allocation2 + $0x30] sm:$0xf]
        %v289 = vld [vmem:[#allocation2 + $0x34] sm:$0xf]
        %v290 = vld [vmem:[#allocation2 + $0x38] sm:$0xf]
        %v291 = vld [vmem:[#allocation2 + $0x3c] sm:$0xf]
        %v292 = vld [vmem:[%s3 + $0x1] sm:$0x1]
        %v293 = vlaneseq
        %v294 = vshrl.u32 %v293, 7
        %v295 = vsub.s32 0, %v294
        %v296 = vrot.slane %v292, %v295
        %v313 = vunpack.c.l.b16 %v276
        %v314 = vunpack.c.l.b16 %v277
        %v315 = vunpack.c.l.b16 %v278
        %v316 = vunpack.c.l.b16 %v279
        %v317 = vunpack.c.l.b16 %v280
        %v318 = vunpack.c.l.b16 %v281
        %v319 = vunpack.c.l.b16 %v282
        %v320 = vunpack.c.l.b16 %v283
        %v321 = vunpack.c.l.b16 %v284
        %v322 = vunpack.c.l.b16 %v285
        %v323 = vunpack.c.l.b16 %v286
        %v324 = vunpack.c.l.b16 %v287
        %v325 = vunpack.c.l.b16 %v288
        %v326 = vunpack.c.l.b16 %v289
        %v327 = vunpack.c.l.b16 %v290
        %v328 = vunpack.c.l.b16 %v291
        %v329 = vpack.c.b16 %v314, %v313
        %v330 = vpack.c.b16 %v316, %v315
        %v331 = vpack.c.b16 %v318, %v317
        %v332 = vpack.c.b16 %v320, %v319
        %v333 = vpack.c.b16 %v322, %v321
        %v334 = vpack.c.b16 %v324, %v323
        %v335 = vpack.c.b16 %v326, %v325
        %v336 = vpack.c.b16 %v328, %v327
        %345 = vmatprep.subr.bf16.mxu0 0
        %346 = vmatpush1.bf16.msra.mxu0 %v329
        %347 = vmatprep.subr.bf16.mxu0 0
        %348 = vmatpush1.bf16.msra.mxu0 %v330
        %349 = vmatprep.subr.bf16.mxu0 0
        %350 = vmatpush1.bf16.msra.mxu0 %v331
        %351 = vmatprep.subr.bf16.mxu0 0
        %352 = vmatpush1.bf16.msra.mxu0 %v332
        %353 = vmatprep.subr.bf16.mxu0 0
        %354 = vmatpush1.bf16.msra.mxu0 %v333
        %355 = vmatprep.subr.bf16.mxu0 0
        %356 = vmatpush1.bf16.msra.mxu0 %v334
        %357 = vmatprep.subr.bf16.mxu0 0
        %358 = vmatpush1.bf16.msra.mxu0 %v335
        %359 = vmatprep.subr.bf16.mxu0 0
        %360 = vmatpush1.bf16.msra.mxu0 %v336
        %361 = vmatprep.subr.bf16.mxu0 0
        %362 = vmatpush1.bf16.msra.mxu0 0
        %363 = vmatprep.subr.bf16.mxu0 0
        %364 = vmatpush1.bf16.msra.mxu0 0
        %365 = vmatprep.subr.bf16.mxu0 0
        %366 = vmatpush1.bf16.msra.mxu0 0
        %367 = vmatprep.subr.bf16.mxu0 0
        %368 = vmatpush1.bf16.msra.mxu0 0
        %369 = vmatprep.subr.bf16.mxu0 0
        %370 = vmatpush1.bf16.msra.mxu0 0
        %371 = vmatprep.subr.bf16.mxu0 0
        %372 = vmatpush1.bf16.msra.mxu0 0
        %373 = vmatprep.subr.bf16.mxu0 0
        %374 = vmatpush1.bf16.msra.mxu0 0
        %375 = vmatprep.subr.bf16.mxu0 0
        %376 = vmatpush1.bf16.msra.mxu0 0
        %377 = vmatprep.mubr.bf16.mxu0 0
        %378 = vmatmul.mubr.bf16.gmra.mrb[0].mxu0 %v275
        %v379 = vpop.f32.mrb[0].mxu0
        %v380 = vadd.f32 %v296, %v379
        %v381 = vpop.f32.mrb[0].mxu0
        %v382 = vpop.f32.mrb[0].mxu0
        %v383 = vadd.f32 %v296, %v382
        %v384 = vpop.f32.mrb[0].mxu0
        %385 = vdwg.mxu0
        %v386 = vmax.f32 %v380, 0.0
        %v387 = vmax.f32 %v383, 0.0
        %v388 = vpack.c.bf16 %v387, %v386
        %s389 = scalar_lea.vmem [#allocation2], 64
        %v390 = vld [vmem:[%s389] sm:$0xf]
        %v391 = vld [vmem:[%s389 + $0x4] sm:$0xf]
        %v392 = vld [vmem:[%s389 + $0x8] sm:$0xf]
        %v393 = vld [vmem:[%s389 + $0xc] sm:$0xf]
        %v394 = vld [vmem:[%s389 + $0x10] sm:$0xf]
        %v395 = vld [vmem:[%s389 + $0x14] sm:$0xf]
        %v396 = vld [vmem:[%s389 + $0x18] sm:$0xf]
        %v397 = vld [vmem:[%s389 + $0x1c] sm:$0xf]
        %v398 = vld [vmem:[%s389 + $0x20] sm:$0xf]
        %v399 = vld [vmem:[%s389 + $0x24] sm:$0xf]
        %v400 = vld [vmem:[%s389 + $0x28] sm:$0xf]
        %v401 = vld [vmem:[%s389 + $0x2c] sm:$0xf]
        %v402 = vld [vmem:[%s389 + $0x30] sm:$0xf]
        %v403 = vld [vmem:[%s389 + $0x34] sm:$0xf]
        %v404 = vld [vmem:[%s389 + $0x38] sm:$0xf]
        %v405 = vld [vmem:[%s389 + $0x3c] sm:$0xf]
        %v406 = vld [vmem:[%s3 + $0x2] sm:$0x1]
        %v407 = vlaneseq
        %v408 = vshrl.u32 %v407, 7
        %v409 = vsub.s32 0, %v408
        %v410 = vrot.slane %v406, %v409
        %v427 = vunpack.c.l.b16 %v390
        %v428 = vunpack.c.l.b16 %v391
        %v429 = vunpack.c.l.b16 %v392
        %v430 = vunpack.c.l.b16 %v393
        %v431 = vunpack.c.l.b16 %v394
        %v432 = vunpack.c.l.b16 %v395
        %v433 = vunpack.c.l.b16 %v396
        %v434 = vunpack.c.l.b16 %v397
        %v435 = vunpack.c.l.b16 %v398
        %v436 = vunpack.c.l.b16 %v399
        %v437 = vunpack.c.l.b16 %v400
        %v438 = vunpack.c.l.b16 %v401
        %v439 = vunpack.c.l.b16 %v402
        %v440 = vunpack.c.l.b16 %v403
        %v441 = vunpack.c.l.b16 %v404
        %v442 = vunpack.c.l.b16 %v405
        %v443 = vpack.c.b16 %v428, %v427
        %v444 = vpack.c.b16 %v430, %v429
        %v445 = vpack.c.b16 %v432, %v431
        %v446 = vpack.c.b16 %v434, %v433
        %v447 = vpack.c.b16 %v436, %v435
        %v448 = vpack.c.b16 %v438, %v437
        %v449 = vpack.c.b16 %v440, %v439
        %v450 = vpack.c.b16 %v442, %v441
        %459 = vmatprep.subr.bf16.mxu0 0
        %460 = vmatpush1.bf16.msra.mxu0 %v443
        %461 = vmatprep.subr.bf16.mxu0 0
        %462 = vmatpush1.bf16.msra.mxu0 %v444
        %463 = vmatprep.subr.bf16.mxu0 0
        %464 = vmatpush1.bf16.msra.mxu0 %v445
        %465 = vmatprep.subr.bf16.mxu0 0
        %466 = vmatpush1.bf16.msra.mxu0 %v446
        %467 = vmatprep.subr.bf16.mxu0 0
        %468 = vmatpush1.bf16.msra.mxu0 %v447
        %469 = vmatprep.subr.bf16.mxu0 0
        %470 = vmatpush1.bf16.msra.mxu0 %v448
        %471 = vmatprep.subr.bf16.mxu0 0
        %472 = vmatpush1.bf16.msra.mxu0 %v449
        %473 = vmatprep.subr.bf16.mxu0 0
        %474 = vmatpush1.bf16.msra.mxu0 %v450
        %475 = vmatprep.subr.bf16.mxu0 0
        %476 = vmatpush1.bf16.msra.mxu0 0
        %477 = vmatprep.subr.bf16.mxu0 0
        %478 = vmatpush1.bf16.msra.mxu0 0
        %479 = vmatprep.subr.bf16.mxu0 0
        %480 = vmatpush1.bf16.msra.mxu0 0
        %481 = vmatprep.subr.bf16.mxu0 0
        %482 = vmatpush1.bf16.msra.mxu0 0
        %483 = vmatprep.subr.bf16.mxu0 0
        %484 = vmatpush1.bf16.msra.mxu0 0
        %485 = vmatprep.subr.bf16.mxu0 0
        %486 = vmatpush1.bf16.msra.mxu0 0
        %487 = vmatprep.subr.bf16.mxu0 0
        %488 = vmatpush1.bf16.msra.mxu0 0
        %489 = vmatprep.subr.bf16.mxu0 0
        %490 = vmatpush1.bf16.msra.mxu0 0
        %491 = vmatprep.mubr.bf16.mxu0 0
        %492 = vmatmul.mubr.bf16.gmra.mrb[0].mxu0 %v388
        %v493 = vpop.f32.mrb[0].mxu0
        %v494 = vadd.f32 %v410, %v493
        %v495 = vpop.f32.mrb[0].mxu0
        %v496 = vpop.f32.mrb[0].mxu0
        %v497 = vadd.f32 %v410, %v496
        %v498 = vpop.f32.mrb[0].mxu0
        %499 = vdwg.mxu0
        %v500 = vmax.f32 %v494, 0.0
        %v501 = vmax.f32 %v497, 0.0
        %v502 = vpack.c.bf16 %v501, %v500
        %s503 = scalar_lea.vmem [#allocation2], 128
        %v504 = vld [vmem:[%s503] sm:$0xf]
        %v505 = vld [vmem:[%s503 + $0x4] sm:$0xf]
        %v506 = vld [vmem:[%s503 + $0x8] sm:$0xf]
        %v507 = vld [vmem:[%s503 + $0xc] sm:$0xf]
        %v508 = vld [vmem:[%s503 + $0x10] sm:$0xf]
        %v509 = vld [vmem:[%s503 + $0x14] sm:$0xf]
        %v510 = vld [vmem:[%s503 + $0x18] sm:$0xf]
        %v511 = vld [vmem:[%s503 + $0x1c] sm:$0xf]
        %v512 = vld [vmem:[%s503 + $0x20] sm:$0xf]
        %v513 = vld [vmem:[%s503 + $0x24] sm:$0xf]
        %v514 = vld [vmem:[%s503 + $0x28] sm:$0xf]
        %v515 = vld [vmem:[%s503 + $0x2c] sm:$0xf]
        %v516 = vld [vmem:[%s503 + $0x30] sm:$0xf]
        %v517 = vld [vmem:[%s503 + $0x34] sm:$0xf]
        %v518 = vld [vmem:[%s503 + $0x38] sm:$0xf]
        %v519 = vld [vmem:[%s503 + $0x3c] sm:$0xf]
        %v520 = vld [vmem:[%s3 + $0x3] sm:$0x1]
        %v521 = vlaneseq
        %v522 = vshrl.u32 %v521, 7
        %v523 = vsub.s32 0, %v522
        %v524 = vrot.slane %v520, %v523
        %v541 = vunpack.c.l.b16 %v504
        %v542 = vunpack.c.l.b16 %v505
        %v543 = vunpack.c.l.b16 %v506
        %v544 = vunpack.c.l.b16 %v507
        %v545 = vunpack.c.l.b16 %v508
        %v546 = vunpack.c.l.b16 %v509
        %v547 = vunpack.c.l.b16 %v510
        %v548 = vunpack.c.l.b16 %v511
        %v549 = vunpack.c.l.b16 %v512
        %v550 = vunpack.c.l.b16 %v513
        %v551 = vunpack.c.l.b16 %v514
        %v552 = vunpack.c.l.b16 %v515
        %v553 = vunpack.c.l.b16 %v516
        %v554 = vunpack.c.l.b16 %v517
        %v555 = vunpack.c.l.b16 %v518
        %v556 = vunpack.c.l.b16 %v519
        %v557 = vpack.c.b16 %v542, %v541
        %v558 = vpack.c.b16 %v544, %v543
        %v559 = vpack.c.b16 %v546, %v545
        %v560 = vpack.c.b16 %v548, %v547
        %v561 = vpack.c.b16 %v550, %v549
        %v562 = vpack.c.b16 %v552, %v551
        %v563 = vpack.c.b16 %v554, %v553
        %v564 = vpack.c.b16 %v556, %v555
        %573 = vmatprep.subr.bf16.mxu0 0
        %574 = vmatpush1.bf16.msra.mxu0 %v557
        %575 = vmatprep.subr.bf16.mxu0 0
        %576 = vmatpush1.bf16.msra.mxu0 %v558
        %577 = vmatprep.subr.bf16.mxu0 0
        %578 = vmatpush1.bf16.msra.mxu0 %v559
        %579 = vmatprep.subr.bf16.mxu0 0
        %580 = vmatpush1.bf16.msra.mxu0 %v560
        %581 = vmatprep.subr.bf16.mxu0 0
        %582 = vmatpush1.bf16.msra.mxu0 %v561
        %583 = vmatprep.subr.bf16.mxu0 0
        %584 = vmatpush1.bf16.msra.mxu0 %v562
        %585 = vmatprep.subr.bf16.mxu0 0
        %586 = vmatpush1.bf16.msra.mxu0 %v563
        %587 = vmatprep.subr.bf16.mxu0 0
        %588 = vmatpush1.bf16.msra.mxu0 %v564
        %589 = vmatprep.subr.bf16.mxu0 0
        %590 = vmatpush1.bf16.msra.mxu0 0
        %591 = vmatprep.subr.bf16.mxu0 0
        %592 = vmatpush1.bf16.msra.mxu0 0
        %593 = vmatprep.subr.bf16.mxu0 0
        %594 = vmatpush1.bf16.msra.mxu0 0
        %595 = vmatprep.subr.bf16.mxu0 0
        %596 = vmatpush1.bf16.msra.mxu0 0
        %597 = vmatprep.subr.bf16.mxu0 0
        %598 = vmatpush1.bf16.msra.mxu0 0
        %599 = vmatprep.subr.bf16.mxu0 0
        %600 = vmatpush1.bf16.msra.mxu0 0
        %601 = vmatprep.subr.bf16.mxu0 0
        %602 = vmatpush1.bf16.msra.mxu0 0
        %603 = vmatprep.subr.bf16.mxu0 0
        %604 = vmatpush1.bf16.msra.mxu0 0
        %605 = vmatprep.mubr.bf16.mxu0 0
        %606 = vmatmul.mubr.bf16.gmra.mrb[0].mxu0 %v502
        %v607 = vpop.f32.mrb[0].mxu0
        %v608 = vadd.f32 %v524, %v607
        %v609 = vpop.f32.mrb[0].mxu0
        %v610 = vpop.f32.mrb[0].mxu0
        %v611 = vadd.f32 %v524, %v610
        %v612 = vpop.f32.mrb[0].mxu0
        %613 = vdwg.mxu0
        %v614 = vmax.f32 %v608, 0.0
        %v615 = vmax.f32 %v611, 0.0
        %v616 = vpack.c.bf16 %v615, %v614
        %s617 = scalar_lea.vmem [#allocation2], 192
        %v618 = vld [vmem:[%s617] sm:$0xf]
        %v619 = vld [vmem:[%s617 + $0x4] sm:$0xf]
        %v620 = vld [vmem:[%s617 + $0x8] sm:$0xf]
        %v621 = vld [vmem:[%s617 + $0xc] sm:$0xf]
        %v622 = vld [vmem:[%s617 + $0x10] sm:$0xf]
        %v623 = vld [vmem:[%s617 + $0x14] sm:$0xf]
        %v624 = vld [vmem:[%s617 + $0x18] sm:$0xf]
        %v625 = vld [vmem:[%s617 + $0x1c] sm:$0xf]
        %v626 = vld [vmem:[%s617 + $0x20] sm:$0xf]
        %v627 = vld [vmem:[%s617 + $0x24] sm:$0xf]
        %v628 = vld [vmem:[%s617 + $0x28] sm:$0xf]
        %v629 = vld [vmem:[%s617 + $0x2c] sm:$0xf]
        %v630 = vld [vmem:[%s617 + $0x30] sm:$0xf]
        %v631 = vld [vmem:[%s617 + $0x34] sm:$0xf]
        %v632 = vld [vmem:[%s617 + $0x38] sm:$0xf]
        %v633 = vld [vmem:[%s617 + $0x3c] sm:$0xf]
        %v634 = vld [vmem:[%s3 + $0x4] sm:$0x1]
        %v635 = vlaneseq
        %v636 = vshrl.u32 %v635, 7
        %v637 = vsub.s32 0, %v636
        %v638 = vrot.slane %v634, %v637
        %v655 = vunpack.c.l.b16 %v618
        %v656 = vunpack.c.l.b16 %v619
        %v657 = vunpack.c.l.b16 %v620
        %v658 = vunpack.c.l.b16 %v621
        %v659 = vunpack.c.l.b16 %v622
        %v660 = vunpack.c.l.b16 %v623
        %v661 = vunpack.c.l.b16 %v624
        %v662 = vunpack.c.l.b16 %v625
        %v663 = vunpack.c.l.b16 %v626
        %v664 = vunpack.c.l.b16 %v627
        %v665 = vunpack.c.l.b16 %v628
        %v666 = vunpack.c.l.b16 %v629
        %v667 = vunpack.c.l.b16 %v630
        %v668 = vunpack.c.l.b16 %v631
        %v669 = vunpack.c.l.b16 %v632
        %v670 = vunpack.c.l.b16 %v633
        %v671 = vpack.c.b16 %v656, %v655
        %v672 = vpack.c.b16 %v658, %v657
        %v673 = vpack.c.b16 %v660, %v659
        %v674 = vpack.c.b16 %v662, %v661
        %v675 = vpack.c.b16 %v664, %v663
        %v676 = vpack.c.b16 %v666, %v665
        %v677 = vpack.c.b16 %v668, %v667
        %v678 = vpack.c.b16 %v670, %v669
        %687 = vmatprep.subr.bf16.mxu0 0
        %688 = vmatpush1.bf16.msra.mxu0 %v671
        %689 = vmatprep.subr.bf16.mxu0 0
        %690 = vmatpush1.bf16.msra.mxu0 %v672
        %691 = vmatprep.subr.bf16.mxu0 0
        %692 = vmatpush1.bf16.msra.mxu0 %v673
        %693 = vmatprep.subr.bf16.mxu0 0
        %694 = vmatpush1.bf16.msra.mxu0 %v674
        %695 = vmatprep.subr.bf16.mxu0 0
        %696 = vmatpush1.bf16.msra.mxu0 %v675
        %697 = vmatprep.subr.bf16.mxu0 0
        %698 = vmatpush1.bf16.msra.mxu0 %v676
        %699 = vmatprep.subr.bf16.mxu0 0
        %700 = vmatpush1.bf16.msra.mxu0 %v677
        %701 = vmatprep.subr.bf16.mxu0 0
        %702 = vmatpush1.bf16.msra.mxu0 %v678
        %703 = vmatprep.subr.bf16.mxu0 0
        %704 = vmatpush1.bf16.msra.mxu0 0
        %705 = vmatprep.subr.bf16.mxu0 0
        %706 = vmatpush1.bf16.msra.mxu0 0
        %707 = vmatprep.subr.bf16.mxu0 0
        %708 = vmatpush1.bf16.msra.mxu0 0
        %709 = vmatprep.subr.bf16.mxu0 0
        %710 = vmatpush1.bf16.msra.mxu0 0
        %711 = vmatprep.subr.bf16.mxu0 0
        %712 = vmatpush1.bf16.msra.mxu0 0
        %713 = vmatprep.subr.bf16.mxu0 0
        %714 = vmatpush1.bf16.msra.mxu0 0
        %715 = vmatprep.subr.bf16.mxu0 0
        %716 = vmatpush1.bf16.msra.mxu0 0
        %717 = vmatprep.subr.bf16.mxu0 0
        %718 = vmatpush1.bf16.msra.mxu0 0
        %719 = vmatprep.mubr.bf16.mxu0 0
        %720 = vmatmul.mubr.bf16.gmra.mrb[0].mxu0 %v616
        %v721 = vpop.f32.mrb[0].mxu0
        %v722 = vadd.f32 %v638, %v721
        %v723 = vpop.f32.mrb[0].mxu0
        %v724 = vpop.f32.mrb[0].mxu0
        %v725 = vadd.f32 %v638, %v724
        %v726 = vpop.f32.mrb[0].mxu0
        %727 = vdwg.mxu0
        %728 = vst [vmem:[%s206] sm:$0xff] %v722
        %729 = vst [vmem:[%s206 + $0x8] sm:$0xff] %v725
        %s730 = sand.u32 %s116, 1
        %s731 = scalar_lea.sflag [#allocation4], %s730
        %s732 = sand.u32 %s116, 1
        %s733 = smul.addr %s732, 16
        %s734 = scalar_lea.vmem [#allocation5], %s733
        // Predicated region
        $region41: #{tpu_custom_call.1} parent=35 // pred_check
          %p735 = pneg %p126
        $region42: #{tpu_custom_call.1} parent=35 // pred_check_branch
          %737 = sbr.rel (%p735) target = $region44
        $region43: #{tpu_custom_call.1} parent=35 // pred_region
          %s738 = smul.u32 2, %s19
          %s740 = ssub.s32 256, 256
          %741 = vsyncadd %s731, %s740
          %s742 = smul.addr %s738, 128
          %s743 = scalar_lea.hbm %s4, %s742
          %s744 = sshll.u32 %s734, 4
          %s745 = int_to_ptr.vmem [resolvable:$true] %s744
          %750 = dma.vmem_to_hbm [thread:$0]  %s745, 256, %s743, %s731, 128, 128, 8
        $region44: #{tpu_custom_call.1} parent=35 // pred_fallthru
          _
      $region36: #{tpu_custom_call.1} parent=5 // pred_fallthru
        _
      %p751 = scmp.le.s32.totalorder 2, %s14
      // Predicated region
      $region45: #{tpu_custom_call.1} parent=5 // pred_check
        %p752 = pneg %p751
      $region46: #{tpu_custom_call.1} parent=5 // pred_check_branch
        %754 = sbr.rel (%p752) target = $region48
      $region47: #{tpu_custom_call.1} parent=5 // pred_region
        %s755 = ssub.s32 %s14, 2
        // Predicated region
        $region49: #{tpu_custom_call.1} parent=47 // pred_check
          %p756 = pneg %p132
        $region50: #{tpu_custom_call.1} parent=47 // pred_check_branch
          %758 = sbr.rel (%p756) target = $region52
        $region51: #{tpu_custom_call.1} parent=47 // pred_region
          %s759 = sand.u32 %s117, 1
          %s760 = scalar_lea.sflag [#allocation4], %s759
          %s761 = sand.u32 %s117, 1
          %s762 = smul.addr %s761, 16
          %s763 = scalar_lea.vmem [#allocation5], %s762
          %764 = dma.done %s760, 256
        $region52: #{tpu_custom_call.1} parent=47 // pred_fallthru
          _
      $region48: #{tpu_custom_call.1} parent=5 // pred_fallthru
        _
    $region6: #{tpu_custom_call.1} parent=1 // loop_footer
      %s18 = sadd.s32 1, %s14
    $region7: #{tpu_custom_call.1} parent=1 // loop_footer_branch
      %13 = sbr.rel target = $region3
    $region8: #{tpu_custom_call.1} parent=1 // loop_exit
      _
    %765 = vsyncpa [#allocation3], 1
    %s766 = scalar_lea.sflag [#allocation3], 1
    %767 = vsyncpa %s766, 1
    %768 = vsyncpa [#allocation4], 1
    %s769 = scalar_lea.sflag [#allocation4], 1
    %770 = vsyncpa %s769, 1

</llo_original>
